<compile_context>
chip_gen: v7x
topology: tpu7x:2x2x1
jax: 0.10.0
libtpu: 0.0.40
codegen_flags: <defaults>
</compile_context>

<pallas_src>
import functools
import math

import jax
import jax.numpy as jnp
from jax.experimental import pallas as pl
from jax.experimental.pallas import tpu as pltpu


def _round_up(x, m):
    return ((x + m - 1) // m) * m


# ----------------------------- Pallas kernel --------------------------------
def _masaj_mlp_kernel(obs_ref, act_ref, w1o_ref, w1a_ref, b1_ref,
                      w2_ref, b2_ref, w3_ref, b3_ref, q_ref, *, mxu_dtype):
    # fc1: concat([obs, act]) @ W1 == obs @ W1[:obs_feat] + act @ W1[obs_feat:]
    h1 = jnp.dot(obs_ref[...].astype(mxu_dtype), w1o_ref[...],
                 preferred_element_type=jnp.float32)
    h1 = h1 + jnp.dot(act_ref[...].astype(mxu_dtype), w1a_ref[...],
                      preferred_element_type=jnp.float32)
    # TODO(synk): LayerNorm branch (self.use_layer_norm) is statically False in
    # the reference module (trailing-space attr name), so it is not emitted.
    h1 = jnp.maximum(h1 + b1_ref[...], 0.0)          # f32 bias + ReLU on VPU
    # fc2
    h2 = jnp.dot(h1.astype(mxu_dtype), w2_ref[...],
                 preferred_element_type=jnp.float32)
    h2 = jnp.maximum(h2 + b2_ref[...], 0.0)
    # fc3 (dim_out == 1): contract the hidden axis of both operands so the
    # result is a lane-dense (1, row_tile) slab -> unmasked vector store.
    q = jax.lax.dot_general(
        w3_ref[...], h2.astype(mxu_dtype),
        dimension_numbers=(((1,), (1,)), ((), ())),
        preferred_element_type=jnp.float32)
    q_ref[...] = (q + b3_ref[...]).astype(q_ref.dtype)


# ------------------------------- wrapper -------------------------------------
def masaj_critic_forward(obs_inputs, actions, params, *,
                         row_tile=1024, mxu_dtype=jnp.bfloat16):
    """MASAJCritic forward: q = fc3(relu(fc2(relu(fc1([obs, actions])))))."""
    lead_shape = obs_inputs.shape[:-1]
    obs_feat = obs_inputs.shape[-1]
    n_act = actions.shape[-1]
    rows = math.prod(lead_shape) if lead_shape else 1

    # (bs, t, n_agents, f) -> (rows, f): reshape of contiguous dims, no HBM pass.
    obs2d = obs_inputs.reshape(rows, obs_feat)
    act2d = actions.reshape(rows, n_act)

    w1, b1, w2, b2, w3, b3 = params
    hidden = w1.shape[1]

    # Split fc1's weight so the obs/actions concat never touches HBM; cast the
    # (tiny) weights to the MXU dtype once on the host.
    w1o = w1[:obs_feat].astype(mxu_dtype)
    w1a = w1[obs_feat:].astype(mxu_dtype)
    w2c = w2.astype(mxu_dtype)
    w3r = w3.reshape(1, hidden).astype(mxu_dtype)      # (hidden, 1) -> (1, hidden)
    b1r = b1.reshape(1, hidden).astype(jnp.float32)
    b2r = b2.reshape(1, hidden).astype(jnp.float32)
    b3r = b3.reshape(1, 1).astype(jnp.float32)

    # Tile selection: row_tile is always a multiple of 128 so the lane-dense
    # (1, row_tile) output block is an unmasked vector store, and the whole
    # problem runs in a single grid step whenever it fits.  No jnp.pad — the
    # boundary tile reads padded rows and computes garbage that is sliced off.
    row_tile = min(_round_up(rows, 128), _round_up(row_tile, 128))
    num_tiles = pl.cdiv(rows, row_tile)
    padded_rows = num_tiles * row_tile

    flops = 2 * rows * ((obs_feat + n_act) * hidden + hidden * hidden + hidden)
    bytes_accessed = (
        rows * (obs_feat + n_act) * obs_inputs.dtype.itemsize
        + padded_rows * 4
        + (w1o.size + w1a.size + w2c.size + w3r.size) * w1o.dtype.itemsize
        + (b1r.size + b2r.size + b3r.size) * 4)

    q_slab = pl.pallas_call(
        functools.partial(_masaj_mlp_kernel, mxu_dtype=mxu_dtype),
        out_shape=jax.ShapeDtypeStruct((1, padded_rows), jnp.float32),
        grid_spec=pltpu.PrefetchScalarGridSpec(
            num_scalar_prefetch=0,
            grid=(num_tiles,),
            in_specs=[
                pl.BlockSpec((row_tile, obs_feat), lambda i: (i, 0)),  # obs tile
                pl.BlockSpec((row_tile, n_act), lambda i: (i, 0)),     # act tile
                # constant index_maps: weights/biases DMA'd into VMEM once
                pl.BlockSpec((obs_feat, hidden), lambda i: (0, 0)),    # W1[:obs]
                pl.BlockSpec((n_act, hidden), lambda i: (0, 0)),       # W1[obs:]
                pl.BlockSpec((1, hidden), lambda i: (0, 0)),           # b1
                pl.BlockSpec((hidden, hidden), lambda i: (0, 0)),      # W2
                pl.BlockSpec((1, hidden), lambda i: (0, 0)),           # b2
                pl.BlockSpec((1, hidden), lambda i: (0, 0)),           # W3^T
                pl.BlockSpec((1, 1), lambda i: (0, 0)),                # b3
            ],
            out_specs=pl.BlockSpec((1, row_tile), lambda i: (0, i)),   # lane-dense
        ),
        compiler_params=pltpu.CompilerParams(
            dimension_semantics=("parallel",)),
        cost_estimate=pl.CostEstimate(
            flops=flops, transcendentals=0, bytes_accessed=bytes_accessed),
    )(obs2d, act2d, w1o, w1a, b1r, w2c, b2r, w3r, b3r)

    q = q_slab[0, :rows]
    return q.reshape(lead_shape + (1,))


# ------------------------- deterministic parameter init ---------------------
def init_params(key, input_shape, hidden, dim_out):
    """nn.Linear-style uniform(-1/sqrt(fan_in), 1/sqrt(fan_in)) init."""
    ks = jax.random.split(key, 6)

    def lin(kw, kb, fan_in, fan_out):
        bound = 1.0 / math.sqrt(fan_in)
        w = jax.random.uniform(kw, (fan_in, fan_out), jnp.float32, -bound, bound)
        b = jax.random.uniform(kb, (1, fan_out), jnp.float32, -bound, bound)
        return w, b

    w1, b1 = lin(ks[0], ks[1], input_shape, hidden)
    w2, b2 = lin(ks[2], ks[3], hidden, hidden)
    w3, b3 = lin(ks[4], ks[5], hidden, dim_out)
    return (w1, b1, w2, b2, w3, b3)


# ----------------------------------- main ------------------------------------
if __name__ == "__main__":
    # Small, module-consistent config:
    bs, max_t, n_agents = 2, 8, 4
    obs_vshape = 10
    n_actions = 4
    rnn_hidden_dim = 32

    obs_feat = obs_vshape + n_agents                  # _get_input_shape
    input_shape = obs_feat + n_actions                # continuous_actions=True
    dim_out = 1

    key = jax.random.PRNGKey(0)
    k_obs, k_act, k_par = jax.random.split(key, 3)

    # _build_inputs-style inputs: obs concatenated with agent one-hot id
    obs = jax.random.normal(k_obs, (bs, max_t, n_agents, obs_vshape), jnp.float32)
    agent_ids = jnp.broadcast_to(jnp.eye(n_agents, dtype=jnp.float32),
                                 (bs, max_t, n_agents, n_agents))
    critic_inputs = jnp.concatenate([obs, agent_ids], axis=-1)   # (..., obs_feat)
    actions = jax.random.normal(k_act, (bs, max_t, n_agents, n_actions), jnp.float32)

    params = init_params(k_par, input_shape, rnn_hidden_dim, dim_out)

    q = masaj_critic_forward(critic_inputs, actions, params)
    q = jax.block_until_ready(q)

    # pure-JAX float32 reference
    x = jnp.concatenate([critic_inputs, actions], axis=-1)
    w1, b1, w2, b2, w3, b3 = params
    h1 = jax.nn.relu(x @ w1 + b1[0])
    h2 = jax.nn.relu(h1 @ w2 + b2[0])
    q_ref = h2 @ w3 + b3[0]

    assert q.shape == (bs, max_t, n_agents, dim_out), q.shape
    # MXU dots run in bf16 (f32 accumulation), so compare with relaxed tolerance.
    err = float(jnp.max(jnp.abs(q - q_ref)))
    assert jnp.allclose(q, q_ref, atol=5e-2, rtol=5e-2), err

    print("KERNEL_OK")
</pallas_src>

<mosaic_0001>
module attributes {stable_mosaic.version = 11 : i64} {
  func.func @_masaj_mlp_kernel(%arg0: i32, %arg1: memref<128x14xf32, #tpu.memory_space<vmem>>, %arg2: memref<128x4xf32, #tpu.memory_space<vmem>>, %arg3: memref<14x32xbf16, #tpu.memory_space<vmem>>, %arg4: memref<4x32xbf16, #tpu.memory_space<vmem>>, %arg5: memref<1x32xf32, #tpu.memory_space<vmem>>, %arg6: memref<32x32xbf16, #tpu.memory_space<vmem>>, %arg7: memref<1x32xf32, #tpu.memory_space<vmem>>, %arg8: memref<1x32xbf16, #tpu.memory_space<vmem>>, %arg9: memref<1x1xf32, #tpu.memory_space<vmem>>, %arg10: memref<1x128xf32, #tpu.memory_space<vmem>>) attributes {dimension_semantics = [#tpu.dimension_semantics<parallel>], iteration_bounds = array<i64: 1>, scalar_prefetch = 0 : i64, scratch_operands = 0 : i64, tpu.core_type = #tpu.core_type<tc>, window_params = [{transform_indices = @transform_0, window_bounds = array<i64: 128, 14>}, {transform_indices = @transform_1, window_bounds = array<i64: 128, 4>}, {pipeline_mode = #tpu.pipeline_mode<synchronous>, transform_indices = @transform_2, window_bounds = array<i64: 14, 32>}, {pipeline_mode = #tpu.pipeline_mode<synchronous>, transform_indices = @transform_3, window_bounds = array<i64: 4, 32>}, {pipeline_mode = #tpu.pipeline_mode<synchronous>, transform_indices = @transform_4, window_bounds = array<i64: 1, 32>}, {pipeline_mode = #tpu.pipeline_mode<synchronous>, transform_indices = @transform_5, window_bounds = array<i64: 32, 32>}, {pipeline_mode = #tpu.pipeline_mode<synchronous>, transform_indices = @transform_6, window_bounds = array<i64: 1, 32>}, {pipeline_mode = #tpu.pipeline_mode<synchronous>, transform_indices = @transform_7, window_bounds = array<i64: 1, 32>}, {pipeline_mode = #tpu.pipeline_mode<synchronous>, transform_indices = @transform_8, window_bounds = array<i64: 1, 1>}, {transform_indices = @transform_9, window_bounds = array<i64: 1, 128>}]} {
    %c0 = arith.constant 0 : index
    %c0_0 = arith.constant 0 : index
    %0 = vector.load %arg1[%c0, %c0_0] : memref<128x14xf32, #tpu.memory_space<vmem>>, vector<128x14xf32>
    %1 = arith.truncf %0 : vector<128x14xf32> to vector<128x14xbf16>
    %c0_1 = arith.constant 0 : index
    %c0_2 = arith.constant 0 : index
    %2 = vector.load %arg3[%c0_1, %c0_2] : memref<14x32xbf16, #tpu.memory_space<vmem>>, vector<14x32xbf16>
    %cst = arith.constant dense<0.000000e+00> : vector<128x32xf32>
    %3 = tpu.matmul %1, %2, %cst {dimension_numbers = #tpu.dot_dimension_numbers<[1], [0], [0], [1], [0, 0, 1, 1], [], []>} : vector<128x14xbf16>, vector<14x32xbf16>, vector<128x32xf32> -> vector<128x32xf32>
    %c0_3 = arith.constant 0 : index
    %c0_4 = arith.constant 0 : index
    %4 = vector.load %arg2[%c0_3, %c0_4] : memref<128x4xf32, #tpu.memory_space<vmem>>, vector<128x4xf32>
    %5 = arith.truncf %4 : vector<128x4xf32> to vector<128x4xbf16>
    %c0_5 = arith.constant 0 : index
    %c0_6 = arith.constant 0 : index
    %6 = vector.load %arg4[%c0_5, %c0_6] : memref<4x32xbf16, #tpu.memory_space<vmem>>, vector<4x32xbf16>
    %cst_7 = arith.constant dense<0.000000e+00> : vector<128x32xf32>
    %7 = tpu.matmul %5, %6, %cst_7 {dimension_numbers = #tpu.dot_dimension_numbers<[1], [0], [0], [1], [0, 0, 1, 1], [], []>} : vector<128x4xbf16>, vector<4x32xbf16>, vector<128x32xf32> -> vector<128x32xf32>
    %8 = arith.addf %3, %7 : vector<128x32xf32>
    %c0_8 = arith.constant 0 : index
    %c0_9 = arith.constant 0 : index
    %9 = vector.load %arg5[%c0_8, %c0_9] : memref<1x32xf32, #tpu.memory_space<vmem>>, vector<1x32xf32>
    %10 = vector.broadcast %9 : vector<1x32xf32> to vector<128x32xf32>
    %11 = arith.addf %8, %10 : vector<128x32xf32>
    %cst_10 = arith.constant 0.000000e+00 : f32
    %12 = vector.broadcast %cst_10 : f32 to vector<128x32xf32>
    %13 = arith.maximumf %11, %12 : vector<128x32xf32>
    %14 = arith.truncf %13 : vector<128x32xf32> to vector<128x32xbf16>
    %c0_11 = arith.constant 0 : index
    %c0_12 = arith.constant 0 : index
    %15 = vector.load %arg6[%c0_11, %c0_12] : memref<32x32xbf16, #tpu.memory_space<vmem>>, vector<32x32xbf16>
    %cst_13 = arith.constant dense<0.000000e+00> : vector<128x32xf32>
    %16 = tpu.matmul %14, %15, %cst_13 {dimension_numbers = #tpu.dot_dimension_numbers<[1], [0], [0], [1], [0, 0, 1, 1], [], []>} : vector<128x32xbf16>, vector<32x32xbf16>, vector<128x32xf32> -> vector<128x32xf32>
    %c0_14 = arith.constant 0 : index
    %c0_15 = arith.constant 0 : index
    %17 = vector.load %arg7[%c0_14, %c0_15] : memref<1x32xf32, #tpu.memory_space<vmem>>, vector<1x32xf32>
    %18 = vector.broadcast %17 : vector<1x32xf32> to vector<128x32xf32>
    %19 = arith.addf %16, %18 : vector<128x32xf32>
    %cst_16 = arith.constant 0.000000e+00 : f32
    %20 = vector.broadcast %cst_16 : f32 to vector<128x32xf32>
    %21 = arith.maximumf %19, %20 : vector<128x32xf32>
    %c0_17 = arith.constant 0 : index
    %c0_18 = arith.constant 0 : index
    %22 = vector.load %arg8[%c0_17, %c0_18] : memref<1x32xbf16, #tpu.memory_space<vmem>>, vector<1x32xbf16>
    %23 = arith.truncf %21 : vector<128x32xf32> to vector<128x32xbf16>
    %cst_19 = arith.constant dense<0.000000e+00> : vector<1x128xf32>
    %24 = tpu.matmul %22, %23, %cst_19 {dimension_numbers = #tpu.dot_dimension_numbers<[1], [1], [0], [0], [0, 0, 1, 0], [], []>} : vector<1x32xbf16>, vector<128x32xbf16>, vector<1x128xf32> -> vector<1x128xf32>
    %c0_20 = arith.constant 0 : index
    %c0_21 = arith.constant 0 : index
    %25 = vector.load %arg9[%c0_20, %c0_21] : memref<1x1xf32, #tpu.memory_space<vmem>>, vector<1x1xf32>
    %26 = vector.broadcast %25 : vector<1x1xf32> to vector<1x128xf32>
    %27 = arith.addf %24, %26 : vector<1x128xf32>
    %c0_22 = arith.constant 0 : index
    %c0_23 = arith.constant 0 : index
    %28 = vector.load %arg10[%c0_22, %c0_23] : memref<1x128xf32, #tpu.memory_space<vmem>>, vector<1x128xf32>
    tpu.vector_store %arg10[%c0_22, %c0_23], %27 {strides = array<i32>} : memref<1x128xf32, #tpu.memory_space<vmem>>, vector<1x128xf32>,
    return
  }
  func.func @transform_0(%arg0: i32) -> (i32, i32) {
    %c0_i32 = arith.constant 0 : i32
    %c0_i32_0 = arith.constant 0 : i32
    return %arg0, %c0_i32 : i32, i32
  }
  func.func @transform_1(%arg0: i32) -> (i32, i32) {
    %c0_i32 = arith.constant 0 : i32
    %c0_i32_0 = arith.constant 0 : i32
    return %arg0, %c0_i32 : i32, i32
  }
  func.func @transform_2(%arg0: i32) -> (i32, i32) {
    %c0_i32 = arith.constant 0 : i32
    %c0_i32_0 = arith.constant 0 : i32
    %c0_i32_1 = arith.constant 0 : i32
    return %c0_i32, %c0_i32_0 : i32, i32
  }
  func.func @transform_3(%arg0: i32) -> (i32, i32) {
    %c0_i32 = arith.constant 0 : i32
    %c0_i32_0 = arith.constant 0 : i32
    %c0_i32_1 = arith.constant 0 : i32
    return %c0_i32, %c0_i32_0 : i32, i32
  }
  func.func @transform_4(%arg0: i32) -> (i32, i32) {
    %c0_i32 = arith.constant 0 : i32
    %c0_i32_0 = arith.constant 0 : i32
    %c0_i32_1 = arith.constant 0 : i32
    return %c0_i32, %c0_i32_0 : i32, i32
  }
  func.func @transform_5(%arg0: i32) -> (i32, i32) {
    %c0_i32 = arith.constant 0 : i32
    %c0_i32_0 = arith.constant 0 : i32
    %c0_i32_1 = arith.constant 0 : i32
    return %c0_i32, %c0_i32_0 : i32, i32
  }
  func.func @transform_6(%arg0: i32) -> (i32, i32) {
    %c0_i32 = arith.constant 0 : i32
    %c0_i32_0 = arith.constant 0 : i32
    %c0_i32_1 = arith.constant 0 : i32
    return %c0_i32, %c0_i32_0 : i32, i32
  }
  func.func @transform_7(%arg0: i32) -> (i32, i32) {
    %c0_i32 = arith.constant 0 : i32
    %c0_i32_0 = arith.constant 0 : i32
    %c0_i32_1 = arith.constant 0 : i32
    return %c0_i32, %c0_i32_0 : i32, i32
  }
  func.func @transform_8(%arg0: i32) -> (i32, i32) {
    %c0_i32 = arith.constant 0 : i32
    %c0_i32_0 = arith.constant 0 : i32
    %c0_i32_1 = arith.constant 0 : i32
    return %c0_i32, %c0_i32_0 : i32, i32
  }
  func.func @transform_9(%arg0: i32) -> (i32, i32) {
    %c0_i32 = arith.constant 0 : i32
    %c0_i32_0 = arith.constant 0 : i32
    return %c0_i32, %arg0 : i32, i32
  }
}

</mosaic_0001>

<llo_original>
// kernel: tpu_custom_call.1
$region0: #{tpu_custom_call.1}
  #allocation0 [shape = 'u32[]', space=smem, size = 0x4, offset = 0x4, fixed_abs, tag = 'smem constant byte address 0x4 - core index']
  #allocation1 [shape = 'u32[144,128]{1,0:T(1,128)}', space=vmem, size = 0x12000, scoped, tag = 'internal scratch']
  #allocation2 [shape = 'f32[1,1]{1,0:T(1,128)S(1)}', space=vmem, size = 0x200, scoped, tag = 'scoped memory for tpu_custom_call.1']
  %s0 = inlined_call_operand.vmem [shape: f32[64,14], index: 0, kind: input, shape index: {}]
  %s1 = inlined_call_operand.vmem [shape: f32[64,4], index: 1, kind: input, shape index: {}]
  %s2 = inlined_call_operand.vmem [shape: bf16[14,32], index: 2, kind: input, shape index: {}]
  %s3 = inlined_call_operand.vmem [shape: bf16[4,32], index: 3, kind: input, shape index: {}]
  %s4 = inlined_call_operand.vmem [shape: f32[1,32], index: 4, kind: input, shape index: {}]
  %s5 = inlined_call_operand.vmem [shape: bf16[32,32], index: 5, kind: input, shape index: {}]
  %s6 = inlined_call_operand.vmem [shape: f32[1,32], index: 6, kind: input, shape index: {}]
  %s7 = inlined_call_operand.vmem [shape: bf16[1,32], index: 7, kind: input, shape index: {}]
  %s8 = inlined_call_operand.<no memory space> [shape: f32[1,1], index: 8, kind: input, shape index: {}]
  %s9 = inlined_call_operand.hbm [shape: f32[1,128], index: 9, kind: output, shape index: {}]
  %s10 = sld [smem:[#allocation0]]
  $region46: #{tpu_custom_call.1} parent=0
    _
  %s12 = ssub.s32 1, %s10
  %s13 = scalar_select 0, %s12, %s10
  %v14 = vstv %s8
  %15 = vst [vmem:[#allocation2] sm:$0x1] %v14
  $region1: #{tpu_custom_call.1} parent=0
    #allocation3 [shape = 'u8[512]{0}', space=vmem, size = 0x400, scoped, tag = 'output window, operand 0, single buffered']
    #allocation4 [shape = 's32[1]{0}', space=sflag, size = 0x4, scoped, tag = 'scoped memory for tpu_custom_call.1']
    %16 = vsyncpa [#allocation4], 0
    // Predicated region
    $region2: #{tpu_custom_call.1} parent=1 // pred_check
      _
    $region3: #{tpu_custom_call.1} parent=1 // pred_check_branch
      %18 = sbr.rel (0) target = $region5
    $region4: #{tpu_custom_call.1} parent=1 // pred_region
      _
    $region5: #{tpu_custom_call.1} parent=1 // pred_fallthru
      _
    // Predicated region
    $region6: #{tpu_custom_call.1} parent=1 // pred_check
      _
    $region7: #{tpu_custom_call.1} parent=1 // pred_check_branch
      %20 = sbr.rel (0) target = $region9
    $region8: #{tpu_custom_call.1} parent=1 // pred_region
      _
    $region9: #{tpu_custom_call.1} parent=1 // pred_fallthru
      _
    // Predicated region
    $region10: #{tpu_custom_call.1} parent=1 // pred_check
      _
    $region11: #{tpu_custom_call.1} parent=1 // pred_check_branch
      %22 = sbr.rel (0) target = $region13
    $region12: #{tpu_custom_call.1} parent=1 // pred_region
      _
    $region13: #{tpu_custom_call.1} parent=1 // pred_fallthru
      _
    // Predicated region
    $region14: #{tpu_custom_call.1} parent=1 // pred_check
      _
    $region15: #{tpu_custom_call.1} parent=1 // pred_check_branch
      %24 = sbr.rel (0) target = $region17
    $region16: #{tpu_custom_call.1} parent=1 // pred_region
      _
    $region17: #{tpu_custom_call.1} parent=1 // pred_fallthru
      _
    // Predicated region
    $region18: #{tpu_custom_call.1} parent=1 // pred_check
      _
    $region19: #{tpu_custom_call.1} parent=1 // pred_check_branch
      %26 = sbr.rel (0) target = $region21
    $region20: #{tpu_custom_call.1} parent=1 // pred_region
      _
    $region21: #{tpu_custom_call.1} parent=1 // pred_fallthru
      _
    // Predicated region
    $region22: #{tpu_custom_call.1} parent=1 // pred_check
      _
    $region23: #{tpu_custom_call.1} parent=1 // pred_check_branch
      %28 = sbr.rel (0) target = $region25
    $region24: #{tpu_custom_call.1} parent=1 // pred_region
      _
    $region25: #{tpu_custom_call.1} parent=1 // pred_fallthru
      _
    // Predicated region
    $region26: #{tpu_custom_call.1} parent=1 // pred_check
      _
    $region27: #{tpu_custom_call.1} parent=1 // pred_check_branch
      %30 = sbr.rel (0) target = $region29
    $region28: #{tpu_custom_call.1} parent=1 // pred_region
      _
    $region29: #{tpu_custom_call.1} parent=1 // pred_fallthru
      _
    // Predicated region
    $region30: #{tpu_custom_call.1} parent=1 // pred_check
      _
    $region31: #{tpu_custom_call.1} parent=1 // pred_check_branch
      %32 = sbr.rel (0) target = $region33
    $region32: #{tpu_custom_call.1} parent=1 // pred_region
      _
    $region33: #{tpu_custom_call.1} parent=1 // pred_fallthru
      _
    // Predicated region
    $region34: #{tpu_custom_call.1} parent=1 // pred_check
      _
    $region35: #{tpu_custom_call.1} parent=1 // pred_check_branch
      %34 = sbr.rel (0) target = $region37
    $region36: #{tpu_custom_call.1} parent=1 // pred_region
      _
    $region37: #{tpu_custom_call.1} parent=1 // pred_fallthru
      _
    %v36 = vld [vmem:[%s0] sm:$0xff]
    %v37 = vld [vmem:[%s0 + $0x8] sm:$0xff]
    %v38 = vld [vmem:[%s0 + $0x10] sm:$0xff]
    %v39 = vld [vmem:[%s0 + $0x18] sm:$0xff]
    %v40 = vld [vmem:[%s0 + $0x20] sm:$0xff]
    %v41 = vld [vmem:[%s0 + $0x28] sm:$0xff]
    %v42 = vld [vmem:[%s0 + $0x30] sm:$0xff]
    %v43 = vld [vmem:[%s0 + $0x38] sm:$0xff]
    %v44 = vld [vmem:[%s0 + $0x40] sm:$0xff]
    %v45 = vld [vmem:[%s0 + $0x48] sm:$0xff]
    %v46 = vld [vmem:[%s0 + $0x50] sm:$0xff]
    %v47 = vld [vmem:[%s0 + $0x58] sm:$0xff]
    %v48 = vld [vmem:[%s0 + $0x60] sm:$0xff]
    %v49 = vld [vmem:[%s0 + $0x68] sm:$0xff]
    %v50 = vld [vmem:[%s0 + $0x70] sm:$0xff]
    %v51 = vld [vmem:[%s0 + $0x78] sm:$0xff]
    %v52 = vpack.c.bf16 %v37, %v36
    %v53 = vpack.c.bf16 %v39, %v38
    %v54 = vpack.c.bf16 %v41, %v40
    %v55 = vpack.c.bf16 %v43, %v42
    %v56 = vpack.c.bf16 %v45, %v44
    %v57 = vpack.c.bf16 %v47, %v46
    %v58 = vpack.c.bf16 %v49, %v48
    %v59 = vpack.c.bf16 %v51, %v50
    %v60 = vld [vmem:[%s2] sm:$0xf]
    %v61 = vld [vmem:[%s2 + $0x4] sm:$0x7]
    %v62 = vld [vmem:[%s1] sm:$0xff]
    %v63 = vld [vmem:[%s1 + $0x8] sm:$0xff]
    %v64 = vld [vmem:[%s1 + $0x10] sm:$0xff]
    %v65 = vld [vmem:[%s1 + $0x18] sm:$0xff]
    %v66 = vld [vmem:[%s1 + $0x20] sm:$0xff]
    %v67 = vld [vmem:[%s1 + $0x28] sm:$0xff]
    %v68 = vld [vmem:[%s1 + $0x30] sm:$0xff]
    %v69 = vld [vmem:[%s1 + $0x38] sm:$0xff]
    %v70 = vld [vmem:[%s1 + $0x40] sm:$0xff]
    %v71 = vld [vmem:[%s1 + $0x48] sm:$0xff]
    %v72 = vld [vmem:[%s1 + $0x50] sm:$0xff]
    %v73 = vld [vmem:[%s1 + $0x58] sm:$0xff]
    %v74 = vld [vmem:[%s1 + $0x60] sm:$0xff]
    %v75 = vld [vmem:[%s1 + $0x68] sm:$0xff]
    %v76 = vld [vmem:[%s1 + $0x70] sm:$0xff]
    %v77 = vld [vmem:[%s1 + $0x78] sm:$0xff]
    %v78 = vpack.c.bf16 %v63, %v62
    %v79 = vpack.c.bf16 %v65, %v64
    %v80 = vpack.c.bf16 %v67, %v66
    %v81 = vpack.c.bf16 %v69, %v68
    %v82 = vpack.c.bf16 %v71, %v70
    %v83 = vpack.c.bf16 %v73, %v72
    %v84 = vpack.c.bf16 %v75, %v74
    %v85 = vpack.c.bf16 %v77, %v76
    %v86 = vld [vmem:[%s3] sm:$0x3]
    %vm87 = vcmask 31744
    %v89 = vsel %vm87, %v78, 0
    %v92 = vsel %vm87, %v79, 0
    %v95 = vsel %vm87, %v80, 0
    %v98 = vsel %vm87, %v81, 0
    %v101 = vsel %vm87, %v82, 0
    %v104 = vsel %vm87, %v83, 0
    %v107 = vsel %vm87, %v84, 0
    %v110 = vsel %vm87, %v85, 0
    %vm112 = vcmask 1041408
    %v114 = vsel %vm112, %v86, 0
    %116 = vmatprep.subr.bf16.mxu0 0
    %117 = vmatpush1.bf16.msra.mxu0 %v114
    %118 = vmatprep.subr.bf16.mxu0 0
    %119 = vmatpush1.bf16.msra.mxu0 0
    %120 = vmatprep.subr.bf16.mxu0 0
    %121 = vmatpush1.bf16.msra.mxu0 0
    %122 = vmatprep.subr.bf16.mxu0 0
    %123 = vmatpush1.bf16.msra.mxu0 0
    %124 = vmatprep.subr.bf16.mxu0 0
    %125 = vmatpush1.bf16.msra.mxu0 0
    %126 = vmatprep.subr.bf16.mxu0 0
    %127 = vmatpush1.bf16.msra.mxu0 0
    %128 = vmatprep.subr.bf16.mxu0 0
    %129 = vmatpush1.bf16.msra.mxu0 0
    %130 = vmatprep.subr.bf16.mxu0 0
    %131 = vmatpush1.bf16.msra.mxu0 0
    %132 = vmatprep.subr.bf16.mxu0 0
    %133 = vmatpush1.bf16.msra.mxu0 0
    %134 = vmatprep.subr.bf16.mxu0 0
    %135 = vmatpush1.bf16.msra.mxu0 0
    %136 = vmatprep.subr.bf16.mxu0 0
    %137 = vmatpush1.bf16.msra.mxu0 0
    %138 = vmatprep.subr.bf16.mxu0 0
    %139 = vmatpush1.bf16.msra.mxu0 0
    %140 = vmatprep.subr.bf16.mxu0 0
    %141 = vmatpush1.bf16.msra.mxu0 0
    %142 = vmatprep.subr.bf16.mxu0 0
    %143 = vmatpush1.bf16.msra.mxu0 0
    %144 = vmatprep.subr.bf16.mxu0 0
    %145 = vmatpush1.bf16.msra.mxu0 0
    %146 = vmatprep.subr.bf16.mxu0 0
    %147 = vmatpush1.bf16.msra.mxu0 0
    %148 = vmatprep.mubr.bf16.mxu0 0
    %149 = vmatmul.mubr.bf16.gmra.mrb[0].mxu0 %v89
    %v150 = vpop.f32.mrb[0].mxu0
    %v151 = vadd.f32 0.0, %v150
    %v152 = vpop.f32.mrb[0].mxu0
    %v153 = vpop.f32.mrb[0].mxu0
    %v154 = vadd.f32 0.0, %v153
    %v155 = vpop.f32.mrb[0].mxu0
    %156 = vmatprep.mubr.bf16.mxu0 0
    %157 = vmatmul.mubr.bf16.gmra.mrb[0].mxu0 %v92
    %v158 = vpop.f32.mrb[0].mxu0
    %v159 = vadd.f32 0.0, %v158
    %v160 = vpop.f32.mrb[0].mxu0
    %v161 = vpop.f32.mrb[0].mxu0
    %v162 = vadd.f32 0.0, %v161
    %v163 = vpop.f32.mrb[0].mxu0
    %164 = vmatprep.mubr.bf16.mxu0 0
    %165 = vmatmul.mubr.bf16.gmra.mrb[0].mxu0 %v95
    %v166 = vpop.f32.mrb[0].mxu0
    %v167 = vadd.f32 0.0, %v166
    %v168 = vpop.f32.mrb[0].mxu0
    %v169 = vpop.f32.mrb[0].mxu0
    %v170 = vadd.f32 0.0, %v169
    %v171 = vpop.f32.mrb[0].mxu0
    %172 = vmatprep.mubr.bf16.mxu0 0
    %173 = vmatmul.mubr.bf16.gmra.mrb[0].mxu0 %v98
    %v174 = vpop.f32.mrb[0].mxu0
    %v175 = vadd.f32 0.0, %v174
    %v176 = vpop.f32.mrb[0].mxu0
    %v177 = vpop.f32.mrb[0].mxu0
    %v178 = vadd.f32 0.0, %v177
    %v179 = vpop.f32.mrb[0].mxu0
    %180 = vmatprep.mubr.bf16.mxu0 0
    %181 = vmatmul.mubr.bf16.gmra.mrb[0].mxu0 %v101
    %v182 = vpop.f32.mrb[0].mxu0
    %v183 = vadd.f32 0.0, %v182
    %v184 = vpop.f32.mrb[0].mxu0
    %v185 = vpop.f32.mrb[0].mxu0
    %v186 = vadd.f32 0.0, %v185
    %v187 = vpop.f32.mrb[0].mxu0
    %188 = vmatprep.mubr.bf16.mxu0 0
    %189 = vmatmul.mubr.bf16.gmra.mrb[0].mxu0 %v104
    %v190 = vpop.f32.mrb[0].mxu0
    %v191 = vadd.f32 0.0, %v190
    %v192 = vpop.f32.mrb[0].mxu0
    %v193 = vpop.f32.mrb[0].mxu0
    %v194 = vadd.f32 0.0, %v193
    %v195 = vpop.f32.mrb[0].mxu0
    %196 = vmatprep.mubr.bf16.mxu0 0
    %197 = vmatmul.mubr.bf16.gmra.mrb[0].mxu0 %v107
    %v198 = vpop.f32.mrb[0].mxu0
    %v199 = vadd.f32 0.0, %v198
    %v200 = vpop.f32.mrb[0].mxu0
    %v201 = vpop.f32.mrb[0].mxu0
    %v202 = vadd.f32 0.0, %v201
    %v203 = vpop.f32.mrb[0].mxu0
    %204 = vmatprep.mubr.bf16.mxu0 0
    %205 = vmatmul.mubr.bf16.gmra.mrb[0].mxu0 %v110
    %v206 = vpop.f32.mrb[0].mxu0
    %v207 = vadd.f32 0.0, %v206
    %v208 = vpop.f32.mrb[0].mxu0
    %v209 = vpop.f32.mrb[0].mxu0
    %v210 = vadd.f32 0.0, %v209
    %v211 = vpop.f32.mrb[0].mxu0
    %212 = vdwg.mxu0
    %v215 = vunpack.c.l.b16 %v60
    %v216 = vunpack.c.l.b16 %v61
    %v217 = vpack.c.b16 %v216, %v215
    %vm218 = vcmask 113664
    %v220 = vsel %vm218, %v52, 0
    %v223 = vsel %vm218, %v53, 0
    %v226 = vsel %vm218, %v54, 0
    %v229 = vsel %vm218, %v55, 0
    %v232 = vsel %vm218, %v56, 0
    %v235 = vsel %vm218, %v57, 0
    %v238 = vsel %vm218, %v58, 0
    %v241 = vsel %vm218, %v59, 0
    %vm243 = vcmask 1046528
    %v245 = vsel %vm243, %v217, 0
    %247 = vmatprep.subr.bf16.mxu0 0
    %248 = vmatpush1.bf16.msra.mxu0 %v245
    %249 = vmatprep.subr.bf16.mxu0 0
    %250 = vmatpush1.bf16.msra.mxu0 0
    %251 = vmatprep.subr.bf16.mxu0 0
    %252 = vmatpush1.bf16.msra.mxu0 0
    %253 = vmatprep.subr.bf16.mxu0 0
    %254 = vmatpush1.bf16.msra.mxu0 0
    %255 = vmatprep.subr.bf16.mxu0 0
    %256 = vmatpush1.bf16.msra.mxu0 0
    %257 = vmatprep.subr.bf16.mxu0 0
    %258 = vmatpush1.bf16.msra.mxu0 0
    %259 = vmatprep.subr.bf16.mxu0 0
    %260 = vmatpush1.bf16.msra.mxu0 0
    %261 = vmatprep.subr.bf16.mxu0 0
    %262 = vmatpush1.bf16.msra.mxu0 0
    %263 = vmatprep.subr.bf16.mxu0 0
    %264 = vmatpush1.bf16.msra.mxu0 0
    %265 = vmatprep.subr.bf16.mxu0 0
    %266 = vmatpush1.bf16.msra.mxu0 0
    %267 = vmatprep.subr.bf16.mxu0 0
    %268 = vmatpush1.bf16.msra.mxu0 0
    %269 = vmatprep.subr.bf16.mxu0 0
    %270 = vmatpush1.bf16.msra.mxu0 0
    %271 = vmatprep.subr.bf16.mxu0 0
    %272 = vmatpush1.bf16.msra.mxu0 0
    %273 = vmatprep.subr.bf16.mxu0 0
    %274 = vmatpush1.bf16.msra.mxu0 0
    %275 = vmatprep.subr.bf16.mxu0 0
    %276 = vmatpush1.bf16.msra.mxu0 0
    %277 = vmatprep.subr.bf16.mxu0 0
    %278 = vmatpush1.bf16.msra.mxu0 0
    %279 = vmatprep.mubr.bf16.mxu0 0
    %280 = vmatmul.mubr.bf16.gmra.mrb[0].mxu0 %v220
    %v281 = vpop.f32.mrb[0].mxu0
    %v282 = vadd.f32 %v151, %v281
    %v283 = vpop.f32.mrb[0].mxu0
    %v284 = vpop.f32.mrb[0].mxu0
    %v285 = vadd.f32 %v154, %v284
    %v286 = vpop.f32.mrb[0].mxu0
    %287 = vmatprep.mubr.bf16.mxu0 0
    %288 = vmatmul.mubr.bf16.gmra.mrb[0].mxu0 %v223
    %v289 = vpop.f32.mrb[0].mxu0
    %v290 = vadd.f32 %v159, %v289
    %v291 = vpop.f32.mrb[0].mxu0
    %v292 = vpop.f32.mrb[0].mxu0
    %v293 = vadd.f32 %v162, %v292
    %v294 = vpop.f32.mrb[0].mxu0
    %295 = vmatprep.mubr.bf16.mxu0 0
    %296 = vmatmul.mubr.bf16.gmra.mrb[0].mxu0 %v226
    %v297 = vpop.f32.mrb[0].mxu0
    %v298 = vadd.f32 %v167, %v297
    %v299 = vpop.f32.mrb[0].mxu0
    %v300 = vpop.f32.mrb[0].mxu0
    %v301 = vadd.f32 %v170, %v300
    %v302 = vpop.f32.mrb[0].mxu0
    %303 = vmatprep.mubr.bf16.mxu0 0
    %304 = vmatmul.mubr.bf16.gmra.mrb[0].mxu0 %v229
    %v305 = vpop.f32.mrb[0].mxu0
    %v306 = vadd.f32 %v175, %v305
    %v307 = vpop.f32.mrb[0].mxu0
    %v308 = vpop.f32.mrb[0].mxu0
    %v309 = vadd.f32 %v178, %v308
    %v310 = vpop.f32.mrb[0].mxu0
    %311 = vmatprep.mubr.bf16.mxu0 0
    %312 = vmatmul.mubr.bf16.gmra.mrb[0].mxu0 %v232
    %v313 = vpop.f32.mrb[0].mxu0
    %v314 = vadd.f32 %v183, %v313
    %v315 = vpop.f32.mrb[0].mxu0
    %v316 = vpop.f32.mrb[0].mxu0
    %v317 = vadd.f32 %v186, %v316
    %v318 = vpop.f32.mrb[0].mxu0
    %319 = vmatprep.mubr.bf16.mxu0 0
    %320 = vmatmul.mubr.bf16.gmra.mrb[0].mxu0 %v235
    %v321 = vpop.f32.mrb[0].mxu0
    %v322 = vadd.f32 %v191, %v321
    %v323 = vpop.f32.mrb[0].mxu0
    %v324 = vpop.f32.mrb[0].mxu0
    %v325 = vadd.f32 %v194, %v324
    %v326 = vpop.f32.mrb[0].mxu0
    %327 = vmatprep.mubr.bf16.mxu0 0
    %328 = vmatmul.mubr.bf16.gmra.mrb[0].mxu0 %v238
    %v329 = vpop.f32.mrb[0].mxu0
    %v330 = vadd.f32 %v199, %v329
    %v331 = vpop.f32.mrb[0].mxu0
    %v332 = vpop.f32.mrb[0].mxu0
    %v333 = vadd.f32 %v202, %v332
    %v334 = vpop.f32.mrb[0].mxu0
    %335 = vmatprep.mubr.bf16.mxu0 0
    %336 = vmatmul.mubr.bf16.gmra.mrb[0].mxu0 %v241
    %v337 = vpop.f32.mrb[0].mxu0
    %v338 = vadd.f32 %v207, %v337
    %v339 = vpop.f32.mrb[0].mxu0
    %v340 = vpop.f32.mrb[0].mxu0
    %v341 = vadd.f32 %v210, %v340
    %v342 = vpop.f32.mrb[0].mxu0
    %343 = vdwg.mxu0
    %v344 = vld [vmem:[%s4] sm:$0x1]
    %v346 = vlaneseq
    %v347 = vshrl.u32 %v346, 7
    %v348 = vsub.s32 0, %v347
    %v349 = vrot.slane %v344, %v348
    %v351 = vadd.f32 %v282, %v349
    %v352 = vadd.f32 %v285, %v349
    %v353 = vadd.f32 %v290, %v349
    %v354 = vadd.f32 %v293, %v349
    %v355 = vadd.f32 %v298, %v349
    %v356 = vadd.f32 %v301, %v349
    %v357 = vadd.f32 %v306, %v349
    %v358 = vadd.f32 %v309, %v349
    %v359 = vadd.f32 %v314, %v349
    %v360 = vadd.f32 %v317, %v349
    %v361 = vadd.f32 %v322, %v349
    %v362 = vadd.f32 %v325, %v349
    %v363 = vadd.f32 %v330, %v349
    %v364 = vadd.f32 %v333, %v349
    %v365 = vadd.f32 %v338, %v349
    %v366 = vadd.f32 %v341, %v349
    %v367 = vmax.f32 %v351, 0.0
    %v368 = vmax.f32 %v352, 0.0
    %v369 = vmax.f32 %v353, 0.0
    %v370 = vmax.f32 %v354, 0.0
    %v371 = vmax.f32 %v355, 0.0
    %v372 = vmax.f32 %v356, 0.0
    %v373 = vmax.f32 %v357, 0.0
    %v374 = vmax.f32 %v358, 0.0
    %v375 = vmax.f32 %v359, 0.0
    %v376 = vmax.f32 %v360, 0.0
    %v377 = vmax.f32 %v361, 0.0
    %v378 = vmax.f32 %v362, 0.0
    %v379 = vmax.f32 %v363, 0.0
    %v380 = vmax.f32 %v364, 0.0
    %v381 = vmax.f32 %v365, 0.0
    %v382 = vmax.f32 %v366, 0.0
    %v383 = vpack.c.bf16 %v368, %v367
    %v384 = vpack.c.bf16 %v370, %v369
    %v385 = vpack.c.bf16 %v372, %v371
    %v386 = vpack.c.bf16 %v374, %v373
    %v387 = vpack.c.bf16 %v376, %v375
    %v388 = vpack.c.bf16 %v378, %v377
    %v389 = vpack.c.bf16 %v380, %v379
    %v390 = vpack.c.bf16 %v382, %v381
    %v391 = vld [vmem:[%s5] sm:$0xf]
    %v392 = vld [vmem:[%s5 + $0x4] sm:$0xf]
    %v393 = vld [vmem:[%s5 + $0x8] sm:$0xf]
    %v394 = vld [vmem:[%s5 + $0xc] sm:$0xf]
    %v395 = vld [vmem:[%s6] sm:$0x1]
    %v397 = vlaneseq
    %v398 = vshrl.u32 %v397, 7
    %v399 = vsub.s32 0, %v398
    %v400 = vrot.slane %v395, %v399
    %v406 = vunpack.c.l.b16 %v391
    %v407 = vunpack.c.l.b16 %v392
    %v408 = vunpack.c.l.b16 %v393
    %v409 = vunpack.c.l.b16 %v394
    %v410 = vpack.c.b16 %v407, %v406
    %v411 = vpack.c.b16 %v409, %v408
    %vm414 = vcmask 261120
    %v416 = vsel %vm414, %v383, 0
    %v419 = vsel %vm414, %v384, 0
    %v422 = vsel %vm414, %v385, 0
    %v425 = vsel %vm414, %v386, 0
    %v428 = vsel %vm414, %v387, 0
    %v431 = vsel %vm414, %v388, 0
    %v434 = vsel %vm414, %v389, 0
    %v437 = vsel %vm414, %v390, 0
    %439 = vmatprep.subr.bf16.mxu0 0
    %440 = vmatpush1.bf16.msra.mxu0 %v410
    %441 = vmatprep.subr.bf16.mxu0 0
    %442 = vmatpush1.bf16.msra.mxu0 %v411
    %443 = vmatprep.subr.bf16.mxu0 0
    %444 = vmatpush1.bf16.msra.mxu0 0
    %445 = vmatprep.subr.bf16.mxu0 0
    %446 = vmatpush1.bf16.msra.mxu0 0
    %447 = vmatprep.subr.bf16.mxu0 0
    %448 = vmatpush1.bf16.msra.mxu0 0
    %449 = vmatprep.subr.bf16.mxu0 0
    %450 = vmatpush1.bf16.msra.mxu0 0
    %451 = vmatprep.subr.bf16.mxu0 0
    %452 = vmatpush1.bf16.msra.mxu0 0
    %453 = vmatprep.subr.bf16.mxu0 0
    %454 = vmatpush1.bf16.msra.mxu0 0
    %455 = vmatprep.subr.bf16.mxu0 0
    %456 = vmatpush1.bf16.msra.mxu0 0
    %457 = vmatprep.subr.bf16.mxu0 0
    %458 = vmatpush1.bf16.msra.mxu0 0
    %459 = vmatprep.subr.bf16.mxu0 0
    %460 = vmatpush1.bf16.msra.mxu0 0
    %461 = vmatprep.subr.bf16.mxu0 0
    %462 = vmatpush1.bf16.msra.mxu0 0
    %463 = vmatprep.subr.bf16.mxu0 0
    %464 = vmatpush1.bf16.msra.mxu0 0
    %465 = vmatprep.subr.bf16.mxu0 0
    %466 = vmatpush1.bf16.msra.mxu0 0
    %467 = vmatprep.subr.bf16.mxu0 0
    %468 = vmatpush1.bf16.msra.mxu0 0
    %469 = vmatprep.subr.bf16.mxu0 0
    %470 = vmatpush1.bf16.msra.mxu0 0
    %471 = vmatprep.mubr.bf16.mxu0 0
    %472 = vmatmul.mubr.bf16.gmra.mrb[0].mxu0 %v416
    %v473 = vpop.f32.mrb[0].mxu0
    %v474 = vadd.f32 %v400, %v473
    %v475 = vpop.f32.mrb[0].mxu0
    %v476 = vpop.f32.mrb[0].mxu0
    %v477 = vadd.f32 %v400, %v476
    %v478 = vpop.f32.mrb[0].mxu0
    %479 = vmatprep.mubr.bf16.mxu0 0
    %480 = vmatmul.mubr.bf16.gmra.mrb[0].mxu0 %v419
    %v481 = vpop.f32.mrb[0].mxu0
    %v482 = vadd.f32 %v400, %v481
    %v483 = vpop.f32.mrb[0].mxu0
    %v484 = vpop.f32.mrb[0].mxu0
    %v485 = vadd.f32 %v400, %v484
    %v486 = vpop.f32.mrb[0].mxu0
    %487 = vmatprep.mubr.bf16.mxu0 0
    %488 = vmatmul.mubr.bf16.gmra.mrb[0].mxu0 %v422
    %v489 = vpop.f32.mrb[0].mxu0
    %v490 = vadd.f32 %v400, %v489
    %v491 = vpop.f32.mrb[0].mxu0
    %v492 = vpop.f32.mrb[0].mxu0
    %v493 = vadd.f32 %v400, %v492
    %v494 = vpop.f32.mrb[0].mxu0
    %495 = vmatprep.mubr.bf16.mxu0 0
    %496 = vmatmul.mubr.bf16.gmra.mrb[0].mxu0 %v425
    %v497 = vpop.f32.mrb[0].mxu0
    %v498 = vadd.f32 %v400, %v497
    %v499 = vpop.f32.mrb[0].mxu0
    %v500 = vpop.f32.mrb[0].mxu0
    %v501 = vadd.f32 %v400, %v500
    %v502 = vpop.f32.mrb[0].mxu0
    %503 = vmatprep.mubr.bf16.mxu0 0
    %504 = vmatmul.mubr.bf16.gmra.mrb[0].mxu0 %v428
    %v505 = vpop.f32.mrb[0].mxu0
    %v506 = vadd.f32 %v400, %v505
    %v507 = vpop.f32.mrb[0].mxu0
    %v508 = vpop.f32.mrb[0].mxu0
    %v509 = vadd.f32 %v400, %v508
    %v510 = vpop.f32.mrb[0].mxu0
    %511 = vmatprep.mubr.bf16.mxu0 0
    %512 = vmatmul.mubr.bf16.gmra.mrb[0].mxu0 %v431
    %v513 = vpop.f32.mrb[0].mxu0
    %v514 = vadd.f32 %v400, %v513
    %v515 = vpop.f32.mrb[0].mxu0
    %v516 = vpop.f32.mrb[0].mxu0
    %v517 = vadd.f32 %v400, %v516
    %v518 = vpop.f32.mrb[0].mxu0
    %519 = vmatprep.mubr.bf16.mxu0 0
    %520 = vmatmul.mubr.bf16.gmra.mrb[0].mxu0 %v434
    %v521 = vpop.f32.mrb[0].mxu0
    %v522 = vadd.f32 %v400, %v521
    %v523 = vpop.f32.mrb[0].mxu0
    %v524 = vpop.f32.mrb[0].mxu0
    %v525 = vadd.f32 %v400, %v524
    %v526 = vpop.f32.mrb[0].mxu0
    %527 = vmatprep.mubr.bf16.mxu0 0
    %528 = vmatmul.mubr.bf16.gmra.mrb[0].mxu0 %v437
    %v529 = vpop.f32.mrb[0].mxu0
    %v530 = vadd.f32 %v400, %v529
    %v531 = vpop.f32.mrb[0].mxu0
    %v532 = vpop.f32.mrb[0].mxu0
    %v533 = vadd.f32 %v400, %v532
    %v534 = vpop.f32.mrb[0].mxu0
    %535 = vdwg.mxu0
    %v536 = vmax.f32 %v474, 0.0
    %v537 = vmax.f32 %v477, 0.0
    %v538 = vmax.f32 %v482, 0.0
    %v539 = vmax.f32 %v485, 0.0
    %v540 = vmax.f32 %v490, 0.0
    %v541 = vmax.f32 %v493, 0.0
    %v542 = vmax.f32 %v498, 0.0
    %v543 = vmax.f32 %v501, 0.0
    %v544 = vmax.f32 %v506, 0.0
    %v545 = vmax.f32 %v509, 0.0
    %v546 = vmax.f32 %v514, 0.0
    %v547 = vmax.f32 %v517, 0.0
    %v548 = vmax.f32 %v522, 0.0
    %v549 = vmax.f32 %v525, 0.0
    %v550 = vmax.f32 %v530, 0.0
    %v551 = vmax.f32 %v533, 0.0
    %v552 = vld [vmem:[%s7] sm:$0x1]
    %v553 = vpack.c.bf16 %v537, %v536
    %v554 = vpack.c.bf16 %v539, %v538
    %v555 = vpack.c.bf16 %v541, %v540
    %v556 = vpack.c.bf16 %v543, %v542
    %v557 = vpack.c.bf16 %v545, %v544
    %v558 = vpack.c.bf16 %v547, %v546
    %v559 = vpack.c.bf16 %v549, %v548
    %v560 = vpack.c.bf16 %v551, %v550
    %v561 = vld [vmem:[#allocation2] sm:$0x1]
    %563 = vset.pattern.permute.xlu0 0
    %564 = vperm.xlu0 %563, %v561
    %v565 = vpop.permute.xlu0 %564
    %v567 = vlaneseq
    %v568 = vshrl.u32 %v567, 7
    %v569 = vsub.s32 0, %v568
    %v570 = vrot.slane %v565, %v569
    %v572 = vsel %vm414, %v552, 0
    %v575 = vsel %vm414, %v553, 0
    %v578 = vsel %vm414, %v554, 0
    %v581 = vsel %vm414, %v555, 0
    %v584 = vsel %vm414, %v556, 0
    %v587 = vsel %vm414, %v557, 0
    %v590 = vsel %vm414, %v558, 0
    %v593 = vsel %vm414, %v559, 0
    %v596 = vsel %vm414, %v560, 0
    %598 = vmatprep.subr.bf16.mxu0 0
    %599 = vmatpush1.bf16.xpose.msra.mxu0 %v575
    %600 = vmatprep.subr.bf16.mxu0 0
    %601 = vmatpush1.bf16.xpose.msra.mxu0 %v578
    %602 = vmatprep.subr.bf16.mxu0 0
    %603 = vmatpush1.bf16.xpose.msra.mxu0 %v581
    %604 = vmatprep.subr.bf16.mxu0 0
    %605 = vmatpush1.bf16.xpose.msra.mxu0 %v584
    %606 = vmatprep.subr.bf16.mxu0 0
    %607 = vmatpush1.bf16.xpose.msra.mxu0 %v587
    %608 = vmatprep.subr.bf16.mxu0 0
    %609 = vmatpush1.bf16.xpose.msra.mxu0 %v590
    %610 = vmatprep.subr.bf16.mxu0 0
    %611 = vmatpush1.bf16.xpose.msra.mxu0 %v593
    %612 = vmatprep.subr.bf16.mxu0 0
    %613 = vmatpush1.bf16.xpose.msra.mxu0 %v596
    %614 = vmatprep.subr.bf16.mxu0 0
    %615 = vmatpush1.bf16.xpose.msra.mxu0 0
    %616 = vmatprep.subr.bf16.mxu0 0
    %617 = vmatpush1.bf16.xpose.msra.mxu0 0
    %618 = vmatprep.subr.bf16.mxu0 0
    %619 = vmatpush1.bf16.xpose.msra.mxu0 0
    %620 = vmatprep.subr.bf16.mxu0 0
    %621 = vmatpush1.bf16.xpose.msra.mxu0 0
    %622 = vmatprep.subr.bf16.mxu0 0
    %623 = vmatpush1.bf16.xpose.msra.mxu0 0
    %624 = vmatprep.subr.bf16.mxu0 0
    %625 = vmatpush1.bf16.xpose.msra.mxu0 0
    %626 = vmatprep.subr.bf16.mxu0 0
    %627 = vmatpush1.bf16.xpose.msra.mxu0 0
    %628 = vmatprep.subr.bf16.mxu0 0
    %629 = vmatpush1.bf16.xpose.msra.mxu0 0
    %630 = vmatprep.mubr.bf16.mxu0 0
    %631 = vmatmul.mubr.bf16.gmra.mrb[0].mxu0 %v572
    %v632 = vpop.f32.mrb[0].mxu0
    %v633 = vadd.f32 %v570, %v632
    %v634 = vpop.f32.mrb[0].mxu0
    %v635 = vpop.f32.mrb[0].mxu0
    %v636 = vpop.f32.mrb[0].mxu0
    %637 = vdwg.mxu0
    %638 = vst [vmem:[#allocation3] sm:$0x1] %v633
    // Predicated region
    $region38: #{tpu_custom_call.1} parent=1 // pred_check
      _
    $region39: #{tpu_custom_call.1} parent=1 // pred_check_branch
      %640 = sbr.rel (0) target = $region41
    $region40: #{tpu_custom_call.1} parent=1 // pred_region
      %s642 = ssub.s32 16, 16
      %643 = vsyncadd [#allocation4], %s642
      %s645 = sshll.u32 [#allocation3], 4
      %s646 = int_to_ptr.vmem [resolvable:$true] %s645
      %648 = dma.vmem_to_hbm [thread:$0]  %s646, 16, %s9, [#allocation4]
    $region41: #{tpu_custom_call.1} parent=1 // pred_fallthru
      _
    // Predicated region
    $region42: #{tpu_custom_call.1} parent=1 // pred_check
      _
    $region43: #{tpu_custom_call.1} parent=1 // pred_check_branch
      %650 = sbr.rel (0) target = $region45
    $region44: #{tpu_custom_call.1} parent=1 // pred_region
      %651 = dma.done [#allocation4], 16
    $region45: #{tpu_custom_call.1} parent=1 // pred_fallthru
      _
    %652 = vsyncpa [#allocation4], 1

</llo_original>
